<compile_context>
chip_gen: v7x
topology: tpu7x:2x2x1
jax: 0.10.0
libtpu: 0.0.40
codegen_flags: <defaults>
</compile_context>

<pallas_src>
import math

import jax
import jax.numpy as jnp
from jax import lax
from jax.experimental import pallas as pl
from jax.experimental.pallas import tpu as pltpu


# ---------------------------------------------------------------------------
# Helpers
# ---------------------------------------------------------------------------
def _pow_int(x, n):
    """x ** n for integer n >= 1 via square-and-multiply (VPU muls only)."""
    acc = None
    base = x
    while n > 0:
        if n & 1:
            acc = base if acc is None else acc * base
        n >>= 1
        if n:
            base = base * base
    return acc


def _pick_tiles(B, C, HW, itemsize, target_block_bytes):
    """Choose (b_tile, c_tile, hw_tile) so one input block is ~target bytes."""
    sublane_mult = {4: 8, 2: 16, 1: 32}.get(itemsize, 8)
    lane = 128
    max_elems = max(1, target_block_bytes // itemsize)

    if HW <= max_elems:
        hw_tile = HW                                      # full extent (always legal)
        c_rows = max_elems // HW
        if c_rows >= C:
            c_tile = C
            b_tile = max(1, min(B, max_elems // (C * HW)))
        else:
            c_tile = min(C, max(sublane_mult, (c_rows // sublane_mult) * sublane_mult))
            b_tile = 1
    else:
        # A single channel row already exceeds the budget: tile HW on lanes.
        hw_tile = max(lane, (max_elems // sublane_mult // lane) * lane)
        hw_tile = min(hw_tile, HW)
        c_tile = min(C, sublane_mult)
        b_tile = 1

    return b_tile, c_tile, hw_tile, sublane_mult


# ---------------------------------------------------------------------------
# Kernel: tiled GeM pooling, accumulating into the resident f32 output block.
# grid = (B_tiles, C_tiles, HW_tiles); ("parallel", "parallel", "arbitrary").
# ---------------------------------------------------------------------------
def _make_gem_kernel(p, hw_total, hw_tile, eps):
    inv_p = 1.0 / p
    log_hw = math.log(float(hw_total))
    p_is_int = float(p).is_integer() and 1.0 <= p <= 16.0
    p_int = int(p)
    needs_hw_mask = (hw_tile != hw_total) and (hw_total % hw_tile != 0)

    def gem_kernel(x_ref, o_ref):
        # x_ref: VMEM [b_tile, c_tile, hw_tile] (input dtype)
        # o_ref: VMEM [b_tile, c_tile, 1] f32 -- doubles as the accumulator,
        #        resident across the innermost ("arbitrary") HW grid axis.
        hw = pl.program_id(2)

        @pl.when(hw == 0)
        def _():
            o_ref[...] = jnp.zeros_like(o_ref)

        x = jnp.maximum(x_ref[...].astype(jnp.float32), eps)     # clamp(min=eps) > 0
        if p_is_int:
            xp = _pow_int(x, p_int)            # p=3 default: two VPU muls, no EUP
        else:
            xp = jnp.exp(p * jnp.log(x))       # general p on the EUP

        if needs_hw_mask:
            # Only the last HW tile is ragged; padded lanes must contribute 0.
            # Cheap (1, 1, hw_tile) iota broadcast against xp.
            pos = hw * hw_tile + lax.broadcasted_iota(jnp.int32, (1, 1, hw_tile), 2)
            xp = jnp.where(pos < hw_total, xp, 0.0)

        # Cross-lane (XLU) partial reduction over this HW tile.
        o_ref[...] += jnp.sum(xp, axis=-1, keepdims=True)

        @pl.when(hw == pl.num_programs(2) - 1)
        def _():
            # mean^(1/p) == exp((log(sum) - log(HW)) / p); tiny finalize.
            s = o_ref[...]
            o_ref[...] = jnp.exp((jnp.log(s) - log_hw) * inv_p).astype(o_ref.dtype)

    return gem_kernel


# ---------------------------------------------------------------------------
# Wrapper: GeneralizedMeanPooling.forward (output_size = 1)
# ---------------------------------------------------------------------------
def generalized_mean_pooling(x_nchw, norm, *, eps=1e-6, output_size=1,
                             target_block_bytes=4 << 20,
                             block_b=None, block_c=None, block_hw=None):
    # TODO(synk): only output_size=1 (global GeM) is implemented; general
    # adaptive_avg_pool2d output sizes are not covered by this kernel.
    assert output_size in (1, (1, 1)), "only global pooling (output_size=1) supported"
    p = float(norm)
    assert p > 0.0
    B, C, H, W = x_nchw.shape
    HW = H * W
    itemsize = jnp.dtype(x_nchw.dtype).itemsize

    # Free relayout: merge the contiguous trailing dims (no transpose, no
    # extra HBM round-trip).
    x = x_nchw.reshape(B, C, HW)

    b_tile, c_tile, hw_tile, sublane_mult = _pick_tiles(
        B, C, HW, itemsize, target_block_bytes)

    # v7x megacore: ensure >= 2 blocks along a "parallel" grid axis so both
    # TensorCores get work (no effect on single-core v5e/v6e).
    if pl.cdiv(B, b_tile) * pl.cdiv(C, c_tile) < 2:
        if B >= 2:
            b_tile = pl.cdiv(B, 2)
        elif c_tile == C and C > sublane_mult:
            c_tile = min(C, pl.cdiv(pl.cdiv(C, 2), sublane_mult) * sublane_mult)

    # Expert / test overrides (clamped to the array extents).
    if block_b is not None:
        b_tile = min(int(block_b), B)
    if block_c is not None:
        c_tile = min(int(block_c), C)
    if block_hw is not None:
        hw_tile = min(int(block_hw), HW)

    # Mosaic layout legality: last two block dims divisible by the dtype tile
    # or equal to the full array extent.
    assert hw_tile == HW or hw_tile % 128 == 0, (hw_tile, HW)
    assert c_tile == C or c_tile % sublane_mult == 0, (c_tile, C)

    grid = (pl.cdiv(B, b_tile), pl.cdiv(C, c_tile), pl.cdiv(HW, hw_tile))

    # VMEM budget: double-buffered input + f32 compute temporaries + outputs.
    in_block_bytes = b_tile * c_tile * hw_tile * itemsize
    f32_block_bytes = b_tile * c_tile * hw_tile * 4
    out_block_bytes = b_tile * c_tile * 4
    vmem_limit = 2 * in_block_bytes + 3 * f32_block_bytes + 4 * out_block_bytes + (2 << 20)
    vmem_limit = int(min(48 << 20, max(32 << 20, vmem_limit)))  # safe on v5e/v6e/v7x

    out = pl.pallas_call(
        _make_gem_kernel(p, HW, hw_tile, float(eps)),
        out_shape=jax.ShapeDtypeStruct((B, C, 1), jnp.float32),
        grid=grid,
        in_specs=[pl.BlockSpec((b_tile, c_tile, hw_tile), lambda b, c, h: (b, c, h))],
        out_specs=pl.BlockSpec((b_tile, c_tile, 1), lambda b, c, h: (b, c, 0)),
        compiler_params=pltpu.CompilerParams(
            dimension_semantics=("parallel", "parallel", "arbitrary"),
            vmem_limit_bytes=vmem_limit),
    )(x)

    # Match torch adaptive_avg_pool2d(output_size=1) output shape [B, C, 1, 1].
    out = out.reshape(B, C, 1, 1)
    if out.dtype != x_nchw.dtype:
        out = out.astype(x_nchw.dtype)
    return out


# ---------------------------------------------------------------------------
# Pure-JAX reference for validation
# ---------------------------------------------------------------------------
def reference_gem(x_nchw, norm, eps=1e-6):
    p = float(norm)
    xp = jnp.maximum(x_nchw, eps) ** p
    pooled = jnp.mean(xp, axis=(2, 3), keepdims=True)
    return pooled ** (1.0 / p)


if __name__ == "__main__":
    key = jax.random.PRNGKey(0)

    cases = [
        # (shape, p, kwargs)
        ((2, 256, 16, 16), 3.0, {}),          # default autotiled path, integer p
        ((2, 128, 15, 15), 3.0, {}),          # HW=225 not a multiple of 128 (full-extent lane block)
        ((2, 96, 15, 15), 2.5,                # ragged C tile + tiled/ragged HW + non-integer p
         dict(block_c=64, block_hw=128)),
        ((1, 64, 8, 8), 1.0, {}),             # p=1 (average pooling), B=1 -> megacore split on C
        ((3, 32, 16, 16), 3.0,                # ragged B tile (b_tile=2 over B=3)
         dict(block_b=2)),
    ]

    for i, (shape, p, kwargs) in enumerate(cases):
        key, sub = jax.random.split(key)
        x = jax.random.normal(sub, shape, dtype=jnp.float32)
        y = jax.block_until_ready(generalized_mean_pooling(x, p, **kwargs))
        y_ref = reference_gem(x, p)
        assert y.shape == (shape[0], shape[1], 1, 1), f"case {i} bad shape {y.shape}"
        assert jnp.allclose(y, y_ref, rtol=2e-4, atol=1e-5), f"case {i} mismatch"

    print("KERNEL_OK")
</pallas_src>

<mosaic_0001>
module attributes {stable_mosaic.version = 11 : i64} {
  func.func @gem_kernel(%arg0: i32, %arg1: i32, %arg2: i32, %arg3: memref<1x256x256xf32, #tpu.memory_space<vmem>>, %arg4: memref<1x256x1xf32, #tpu.memory_space<vmem>>) attributes {dimension_semantics = [#tpu.dimension_semantics<parallel>, #tpu.dimension_semantics<parallel>, #tpu.dimension_semantics<arbitrary>], iteration_bounds = array<i64: 2, 1, 1>, scalar_prefetch = 0 : i64, scratch_operands = 0 : i64, tpu.core_type = #tpu.core_type<tc>, window_params = [{transform_indices = @transform_0, window_bounds = array<i64: 1, 256, 256>}, {transform_indices = @transform_1, window_bounds = array<i64: 1, 256, 1>}]} {
    %c0_i32 = arith.constant 0 : i32
    %0 = arith.cmpi eq, %arg2, %c0_i32 : i32
    %1 = arith.extui %0 : i1 to i32
    %c0_i32_0 = arith.constant 0 : i32
    %2 = arith.cmpi ne, %1, %c0_i32_0 : i32
    scf.if %2 {
      %cst_12 = arith.constant 0.000000e+00 : f32
      %16 = vector.broadcast %cst_12 : f32 to vector<1x256x1xf32>
      %c0_13 = arith.constant 0 : index
      %c0_14 = arith.constant 0 : index
      %c0_15 = arith.constant 0 : index
      %17 = vector.load %arg4[%c0_13, %c0_14, %c0_15] : memref<1x256x1xf32, #tpu.memory_space<vmem>>, vector<1x256x1xf32>
      tpu.vector_store %arg4[%c0_13, %c0_14, %c0_15], %16 {strides = array<i32>} : memref<1x256x1xf32, #tpu.memory_space<vmem>>, vector<1x256x1xf32>,
    } else {
    }
    %c0 = arith.constant 0 : index
    %c0_1 = arith.constant 0 : index
    %c0_2 = arith.constant 0 : index
    %3 = vector.load %arg3[%c0, %c0_1, %c0_2] : memref<1x256x256xf32, #tpu.memory_space<vmem>>, vector<1x256x256xf32>
    %cst = arith.constant 9.99999997E-7 : f32
    %4 = vector.broadcast %cst : f32 to vector<1x256x256xf32>
    %5 = arith.maximumf %3, %4 : vector<1x256x256xf32>
    %6 = arith.mulf %5, %5 : vector<1x256x256xf32>
    %7 = arith.mulf %5, %6 : vector<1x256x256xf32>
    %c0_3 = arith.constant 0 : index
    %c0_4 = arith.constant 0 : index
    %c0_5 = arith.constant 0 : index
    %8 = vector.load %arg4[%c0_3, %c0_4, %c0_5] : memref<1x256x1xf32, #tpu.memory_space<vmem>>, vector<1x256x1xf32>
    %cst_6 = arith.constant dense<0.000000e+00> : vector<1x256xf32>
    %9 = vector.multi_reduction <add>, %7, %cst_6 [2] : vector<1x256x256xf32> to vector<1x256xf32>
    %10 = vector.shape_cast %9 : vector<1x256xf32> to vector<1x256x1xf32>
    %11 = arith.addf %8, %10 : vector<1x256x1xf32>
    %c0_7 = arith.constant 0 : index
    %c0_8 = arith.constant 0 : index
    %c0_9 = arith.constant 0 : index
    %12 = vector.load %arg4[%c0_7, %c0_8, %c0_9] : memref<1x256x1xf32, #tpu.memory_space<vmem>>, vector<1x256x1xf32>
    tpu.vector_store %arg4[%c0_7, %c0_8, %c0_9], %11 {strides = array<i32>} : memref<1x256x1xf32, #tpu.memory_space<vmem>>, vector<1x256x1xf32>,
    %c0_i32_10 = arith.constant 0 : i32
    %13 = arith.cmpi eq, %arg2, %c0_i32_10 : i32
    %14 = arith.extui %13 : i1 to i32
    %c0_i32_11 = arith.constant 0 : i32
    %15 = arith.cmpi ne, %14, %c0_i32_11 : i32
    scf.if %15 {
      %c0_12 = arith.constant 0 : index
      %c0_13 = arith.constant 0 : index
      %c0_14 = arith.constant 0 : index
      %16 = vector.load %arg4[%c0_12, %c0_13, %c0_14] : memref<1x256x1xf32, #tpu.memory_space<vmem>>, vector<1x256x1xf32>
      %17 = math.log %16 : vector<1x256x1xf32>
      %cst_15 = arith.constant 5.54517746 : f32
      %18 = vector.broadcast %cst_15 : f32 to vector<1x256x1xf32>
      %19 = arith.subf %17, %18 : vector<1x256x1xf32>
      %cst_16 = arith.constant 0.333333343 : f32
      %20 = vector.broadcast %cst_16 : f32 to vector<1x256x1xf32>
      %21 = arith.mulf %19, %20 : vector<1x256x1xf32>
      %22 = math.exp %21 : vector<1x256x1xf32>
      %c0_17 = arith.constant 0 : index
      %c0_18 = arith.constant 0 : index
      %c0_19 = arith.constant 0 : index
      %23 = vector.load %arg4[%c0_17, %c0_18, %c0_19] : memref<1x256x1xf32, #tpu.memory_space<vmem>>, vector<1x256x1xf32>
      tpu.vector_store %arg4[%c0_17, %c0_18, %c0_19], %22 {strides = array<i32>} : memref<1x256x1xf32, #tpu.memory_space<vmem>>, vector<1x256x1xf32>,
    } else {
    }
    return
  }
  func.func @transform_0(%arg0: i32, %arg1: i32, %arg2: i32) -> (i32, i32, i32) {
    %c0_i32 = arith.constant 0 : i32
    return %arg0, %arg1, %arg2 : i32, i32, i32
  }
  func.func @transform_1(%arg0: i32, %arg1: i32, %arg2: i32) -> (i32, i32, i32) {
    %c0_i32 = arith.constant 0 : i32
    %c0_i32_0 = arith.constant 0 : i32
    return %arg0, %arg1, %c0_i32 : i32, i32, i32
  }
}

</mosaic_0001>

<llo_original>
// kernel: tpu_custom_call.1
$region0: #{tpu_custom_call.1}
  #allocation0 [shape = 'u32[]', space=smem, size = 0x4, offset = 0x4, fixed_abs, tag = 'smem constant byte address 0x4 - core index']
  #allocation1 [shape = 'u32[144,128]{1,0:T(1,128)}', space=vmem, size = 0x12000, scoped, tag = 'internal scratch']
  %s0 = inlined_call_operand.hbm [shape: f32[2,256,256], index: 0, kind: input, shape index: {}]
  %s1 = inlined_call_operand.vmem [shape: f32[2,256,1], index: 1, kind: output, shape index: {}]
  %s2 = sld [smem:[#allocation0]]
  $region49: #{tpu_custom_call.1} parent=0
    _
  %s4 = ssub.s32 1, %s2
  %s5 = scalar_select 0, %s4, %s2
  $region1: #{tpu_custom_call.1} parent=0
    #allocation2 [shape = 'u8[524288]{0}', space=vmem, size = 0x80000, scoped, tag = 'input window, operand 0']
    #allocation3 [shape = 's32[2]{0}', space=sflag, size = 0x8, scoped, tag = 'scoped memory for tpu_custom_call.1']
    %6 = vsyncpa [#allocation3], 0
    %s7 = scalar_lea.sflag [#allocation3], 1
    %8 = vsyncpa %s7, 0
    loop: start=0, step=1, limit=4
    $region2: #{tpu_custom_call.1} parent=1 // loop_pre_header
      _
    $region3: #{tpu_custom_call.1} parent=1 // loop_header
      %s10 = sphi 0, %s14
      %p11 = scmp.ge.s32.totalorder %s10, 4
      %s17 = sphi 0, %s36
      %s18 = sphi 0, %s32
      %s19 = sphi 0, %s28
      %s20 = sphi 0, %s17
      %s21 = sphi 0, %s18
      %s22 = sphi 0, %s19
      %s23 = sphi 0, %s20
      %s24 = sphi 0, %s21
      %s25 = sphi 0, %s22
      %s43 = sphi 0, %s45
      %s46 = sphi 0, %s43
      %s47 = sphi 0, %s46
      %s63 = sphi 0, %s47
      %s71 = sphi 0, %s73
      %s74 = sphi 0, %s71
      %s75 = sphi 0, %s74
      %s91 = sphi 0, %s75
    $region4: #{tpu_custom_call.1} parent=1 // loop_header_branch
      %13 = sbr.rel (%p11) target = $region8
    $region5: #{tpu_custom_call.1} parent=1 // loop_body
      %s15 = ssub.s32 %s10, 1
      %s16 = ssub.s32 %s10, 2
      %s26 = sadd.s32 1, %s19
      %p27 = scmp.ge.s32.totalorder %s26, 1
      %s28 = scalar_select %p27, 0, %s26
      %s29 = sadd.s32 1, %s18
      %s30 = scalar_select %p27, %s29, %s18
      %p31 = scmp.ge.s32.totalorder %s30, 1
      %s32 = scalar_select %p31, 0, %s30
      %s33 = sadd.s32 1, %s17
      %s34 = scalar_select %p31, %s33, %s17
      %p35 = scmp.ge.s32.totalorder %s34, 2
      %s36 = scalar_select %p35, 0, %s34
      %s37 = ssub.s32 %s17, %s36
      %s38 = ssub.s32 %s18, %s32
      %s39 = sor.u32 %s37, %s38
      %s40 = ssub.s32 %s19, %s28
      %s41 = sor.u32 %s39, %s40
      %p42 = scmp.eq.s32.totalorder %s41, 0
      %s44 = sadd.s32 %s43, 1
      %s45 = scalar_select %p42, %s43, %s44
      %p48 = pneg %p42
      %p49 = scmp.eq.s32.totalorder %s10, 1
      %p50 = por %p48, %p49
      %p51 = scmp.ne.s32.totalorder %s43, %s46
      %p52 = scmp.eq.s32.totalorder %s10, 0
      %p53 = por %p51, %p52
      %p54 = scmp.ne.s32.totalorder %s43, %s46
      %p55 = scmp.eq.s32.totalorder %s15, 1
      %p56 = por %p54, %p55
      %p57 = scmp.ne.s32.totalorder %s46, %s47
      %p58 = scmp.eq.s32.totalorder %s15, 0
      %p59 = por %p57, %p58
      %p60 = scmp.ne.s32.totalorder %s46, %s47
      %p61 = scmp.eq.s32.totalorder %s16, 1
      %p62 = por %p60, %p61
      %p64 = scmp.ne.s32.totalorder %s47, %s63
      %p65 = scmp.eq.s32.totalorder %s16, 0
      %p66 = por %p64, %p65
      %s67 = ssub.s32 %s17, %s36
      %s68 = ssub.s32 %s18, %s32
      %s69 = sor.u32 %s67, %s68
      %p70 = scmp.eq.s32.totalorder %s69, 0
      %s72 = sadd.s32 %s71, 1
      %s73 = scalar_select %p70, %s71, %s72
      %p76 = pneg %p70
      %p77 = scmp.eq.s32.totalorder %s10, 1
      %p78 = por %p76, %p77
      %p79 = scmp.ne.s32.totalorder %s71, %s74
      %p80 = scmp.eq.s32.totalorder %s10, 0
      %p81 = por %p79, %p80
      %p82 = scmp.ne.s32.totalorder %s71, %s74
      %p83 = scmp.eq.s32.totalorder %s15, 1
      %p84 = por %p82, %p83
      %p85 = scmp.ne.s32.totalorder %s74, %s75
      %p86 = scmp.eq.s32.totalorder %s15, 0
      %p87 = por %p85, %p86
      %p88 = scmp.ne.s32.totalorder %s74, %s75
      %p89 = scmp.eq.s32.totalorder %s16, 1
      %p90 = por %p88, %p89
      %p92 = scmp.ne.s32.totalorder %s75, %s91
      %p93 = scmp.eq.s32.totalorder %s16, 0
      %p94 = por %p92, %p93
      %p95 = scmp.le.s32.totalorder 1, %s10
      %p96 = scmp.lt.s32.totalorder %s10, 3
      %p97 = pnand %p95, %p96
      %p98 = pneg %p97
      // Predicated region
      $region9: #{tpu_custom_call.1} parent=5 // pred_check
        _
      $region10: #{tpu_custom_call.1} parent=5 // pred_check_branch
        %100 = sbr.rel (%p97) target = $region12
      $region11: #{tpu_custom_call.1} parent=5 // pred_region
        %s101 = ssub.s32 %s10, 1
      $region12: #{tpu_custom_call.1} parent=5 // pred_fallthru
        _
      %p102 = scmp.lt.s32.totalorder %s10, 2
      // Predicated region
      $region13: #{tpu_custom_call.1} parent=5 // pred_check
        %p103 = pneg %p102
      $region14: #{tpu_custom_call.1} parent=5 // pred_check_branch
        %105 = sbr.rel (%p103) target = $region16
      $region15: #{tpu_custom_call.1} parent=5 // pred_region
        // Predicated region
        $region17: #{tpu_custom_call.1} parent=15 // pred_check
          %p106 = pneg %p53
        $region18: #{tpu_custom_call.1} parent=15 // pred_check_branch
          %108 = sbr.rel (%p106) target = $region20
        $region19: #{tpu_custom_call.1} parent=15 // pred_region
          %s109 = sand.u32 %s43, 1
          %s110 = scalar_lea.sflag [#allocation3], %s109
          %s111 = sand.u32 %s43, 1
          %s112 = smul.addr %s111, 512
          %s113 = scalar_lea.vmem [#allocation2], %s112
          %s114 = smul.u32 32, %s18
          %s115 = smul.u32 2, %s19
          %s117 = ssub.s32 8192, 8192
          %118 = vsyncadd %s110, %s117
          %s119 = smul.addr %s114, 2
          %s120 = sadd.s32 %s115, %s119
          %s121 = smul.addr %s17, 64
          %s122 = sadd.s32 %s120, %s121
          %s123 = smul.addr %s122, 128
          %s124 = scalar_lea.hbm %s0, %s123
          %s125 = sshll.u32 %s113, 4
          %s126 = int_to_ptr.vmem [resolvable:$true] %s125
          %131 = dma.hbm_to_vmem [thread:$0]  %s124, 8192, %s126, %s110, 256, 256, 16
        $region20: #{tpu_custom_call.1} parent=15 // pred_fallthru
          _
      $region16: #{tpu_custom_call.1} parent=5 // pred_fallthru
        _
      %p132 = scmp.le.s32.totalorder 1, %s10
      %p133 = scmp.lt.s32.totalorder %s10, 3
      %p134 = pnand %p132, %p133
      %p135 = pneg %p134
      // Predicated region
      $region21: #{tpu_custom_call.1} parent=5 // pred_check
        _
      $region22: #{tpu_custom_call.1} parent=5 // pred_check_branch
        %137 = sbr.rel (%p134) target = $region24
      $region23: #{tpu_custom_call.1} parent=5 // pred_region
        %s138 = ssub.s32 %s10, 1
        %s139 = sand.u32 %s46, 1
        %s140 = scalar_lea.sflag [#allocation3], %s139
        %s141 = sand.u32 %s46, 1
        %s142 = smul.addr %s141, 512
        %s143 = scalar_lea.vmem [#allocation2], %s142
        // Predicated region
        $region25: #{tpu_custom_call.1} parent=23 // pred_check
          %p144 = pneg %p59
        $region26: #{tpu_custom_call.1} parent=23 // pred_check_branch
          %146 = sbr.rel (%p144) target = $region28
        $region27: #{tpu_custom_call.1} parent=23 // pred_region
          %147 = dma.done %s140, 8192
        $region28: #{tpu_custom_call.1} parent=23 // pred_fallthru
          _
        %s148 = sand.u32 %s46, 1
        %s149 = scalar_lea.sflag [#allocation3], %s148
        %s150 = sand.u32 %s46, 1
        %s151 = smul.addr %s150, 512
        %s152 = scalar_lea.vmem [#allocation2], %s151
        %p153 = pneg %p59
        %p154 = pneg %p56
        %p155 = pneg %p87
        %p156 = pneg %p84
        %s157 = smul.u32 32, %s21
        %p158 = scmp.lt.s32.totalorder %s20, 1
        %s159 = scalar_select %p158, %s20, 1
        %p160 = scmp.lt.s32.totalorder %s157, 31
        %s161 = scalar_select %p160, %s157, 31
        %s162 = smul.addr %s159, 32
        %s163 = sadd.s32 %s161, %s162
        %s164 = smul.addr %s163, 8
        %s165 = scalar_lea.vmem %s1, %s164
        %s166 = smul.u32 32, %s21
        %s167 = smul.u32 2, %s22
        %s168 = smul.u32 32, %s21
        %p169 = scmp.lt.s32.totalorder %s20, 1
        %s170 = scalar_select %p169, %s20, 1
        %p171 = scmp.lt.s32.totalorder %s168, 31
        %s172 = scalar_select %p171, %s168, 31
        %s173 = smul.addr %s170, 32
        %s174 = sadd.s32 %s172, %s173
        %s175 = smul.addr %s174, 8
        %s176 = scalar_lea.vmem %s1, %s175
        %s177 = smul.u32 32, %s21
        %p178 = scmp.eq.s32.totalorder %s22, 0
        // Predicated region
        $region29: #{tpu_custom_call.1} parent=23 // pred_check
          %p179 = pneg %p178
        $region30: #{tpu_custom_call.1} parent=23 // pred_check_branch
          %181 = sbr.rel (%p179) target = $region32
        $region31: #{tpu_custom_call.1} parent=23 // pred_region
          %vm182 = vcmask 7168
          %183 = vst.msk [vmem:[%s176] sm:$0xff] %vm182, 0.0
          %184 = vst.msk [vmem:[%s176 + $0x8] sm:$0xff] %vm182, 0.0
          %185 = vst.msk [vmem:[%s176 + $0x10] sm:$0xff] %vm182, 0.0
          %186 = vst.msk [vmem:[%s176 + $0x18] sm:$0xff] %vm182, 0.0
          %187 = vst.msk [vmem:[%s176 + $0x20] sm:$0xff] %vm182, 0.0
          %188 = vst.msk [vmem:[%s176 + $0x28] sm:$0xff] %vm182, 0.0
          %189 = vst.msk [vmem:[%s176 + $0x30] sm:$0xff] %vm182, 0.0
          %190 = vst.msk [vmem:[%s176 + $0x38] sm:$0xff] %vm182, 0.0
          %191 = vst.msk [vmem:[%s176 + $0x40] sm:$0xff] %vm182, 0.0
          %192 = vst.msk [vmem:[%s176 + $0x48] sm:$0xff] %vm182, 0.0
          %193 = vst.msk [vmem:[%s176 + $0x50] sm:$0xff] %vm182, 0.0
          %194 = vst.msk [vmem:[%s176 + $0x58] sm:$0xff] %vm182, 0.0
          %195 = vst.msk [vmem:[%s176 + $0x60] sm:$0xff] %vm182, 0.0
          %196 = vst.msk [vmem:[%s176 + $0x68] sm:$0xff] %vm182, 0.0
          %197 = vst.msk [vmem:[%s176 + $0x70] sm:$0xff] %vm182, 0.0
          %198 = vst.msk [vmem:[%s176 + $0x78] sm:$0xff] %vm182, 0.0
          %199 = vst.msk [vmem:[%s176 + $0x80] sm:$0xff] %vm182, 0.0
          %200 = vst.msk [vmem:[%s176 + $0x88] sm:$0xff] %vm182, 0.0
          %201 = vst.msk [vmem:[%s176 + $0x90] sm:$0xff] %vm182, 0.0
          %202 = vst.msk [vmem:[%s176 + $0x98] sm:$0xff] %vm182, 0.0
          %203 = vst.msk [vmem:[%s176 + $0xa0] sm:$0xff] %vm182, 0.0
          %204 = vst.msk [vmem:[%s176 + $0xa8] sm:$0xff] %vm182, 0.0
          %205 = vst.msk [vmem:[%s176 + $0xb0] sm:$0xff] %vm182, 0.0
          %206 = vst.msk [vmem:[%s176 + $0xb8] sm:$0xff] %vm182, 0.0
          %207 = vst.msk [vmem:[%s176 + $0xc0] sm:$0xff] %vm182, 0.0
          %208 = vst.msk [vmem:[%s176 + $0xc8] sm:$0xff] %vm182, 0.0
          %209 = vst.msk [vmem:[%s176 + $0xd0] sm:$0xff] %vm182, 0.0
          %210 = vst.msk [vmem:[%s176 + $0xd8] sm:$0xff] %vm182, 0.0
          %211 = vst.msk [vmem:[%s176 + $0xe0] sm:$0xff] %vm182, 0.0
          %212 = vst.msk [vmem:[%s176 + $0xe8] sm:$0xff] %vm182, 0.0
          %213 = vst.msk [vmem:[%s176 + $0xf0] sm:$0xff] %vm182, 0.0
          %214 = vst.msk [vmem:[%s176 + $0xf8] sm:$0xff] %vm182, 0.0
        $region32: #{tpu_custom_call.1} parent=23 // pred_fallthru
          _
        %v215 = vld [vmem:[%s143] sm:$0xff]
        %v216 = vld [vmem:[%s143 + $0x8] sm:$0xff]
        %v217 = vld [vmem:[%s143 + $0x10] sm:$0xff]
        %v218 = vld [vmem:[%s143 + $0x18] sm:$0xff]
        %v219 = vld [vmem:[%s143 + $0x20] sm:$0xff]
        %v220 = vld [vmem:[%s143 + $0x28] sm:$0xff]
        %v221 = vld [vmem:[%s143 + $0x30] sm:$0xff]
        %v222 = vld [vmem:[%s143 + $0x38] sm:$0xff]
        %v223 = vld [vmem:[%s143 + $0x40] sm:$0xff]
        %v224 = vld [vmem:[%s143 + $0x48] sm:$0xff]
        %v225 = vld [vmem:[%s143 + $0x50] sm:$0xff]
        %v226 = vld [vmem:[%s143 + $0x58] sm:$0xff]
        %v227 = vld [vmem:[%s143 + $0x60] sm:$0xff]
        %v228 = vld [vmem:[%s143 + $0x68] sm:$0xff]
        %v229 = vld [vmem:[%s143 + $0x70] sm:$0xff]
        %v230 = vld [vmem:[%s143 + $0x78] sm:$0xff]
        %v231 = vld [vmem:[%s143 + $0x80] sm:$0xff]
        %v232 = vld [vmem:[%s143 + $0x88] sm:$0xff]
        %v233 = vld [vmem:[%s143 + $0x90] sm:$0xff]
        %v234 = vld [vmem:[%s143 + $0x98] sm:$0xff]
        %v235 = vld [vmem:[%s143 + $0xa0] sm:$0xff]
        %v236 = vld [vmem:[%s143 + $0xa8] sm:$0xff]
        %v237 = vld [vmem:[%s143 + $0xb0] sm:$0xff]
        %v238 = vld [vmem:[%s143 + $0xb8] sm:$0xff]
        %v239 = vld [vmem:[%s143 + $0xc0] sm:$0xff]
        %v240 = vld [vmem:[%s143 + $0xc8] sm:$0xff]
        %v241 = vld [vmem:[%s143 + $0xd0] sm:$0xff]
        %v242 = vld [vmem:[%s143 + $0xd8] sm:$0xff]
        %v243 = vld [vmem:[%s143 + $0xe0] sm:$0xff]
        %v244 = vld [vmem:[%s143 + $0xe8] sm:$0xff]
        %v245 = vld [vmem:[%s143 + $0xf0] sm:$0xff]
        %v246 = vld [vmem:[%s143 + $0xf8] sm:$0xff]
        %v247 = vld [vmem:[%s143 + $0x100] sm:$0xff]
        %v248 = vld [vmem:[%s143 + $0x108] sm:$0xff]
        %v249 = vld [vmem:[%s143 + $0x110] sm:$0xff]
        %v250 = vld [vmem:[%s143 + $0x118] sm:$0xff]
        %v251 = vld [vmem:[%s143 + $0x120] sm:$0xff]
        %v252 = vld [vmem:[%s143 + $0x128] sm:$0xff]
        %v253 = vld [vmem:[%s143 + $0x130] sm:$0xff]
        %v254 = vld [vmem:[%s143 + $0x138] sm:$0xff]
        %v255 = vld [vmem:[%s143 + $0x140] sm:$0xff]
        %v256 = vld [vmem:[%s143 + $0x148] sm:$0xff]
        %v257 = vld [vmem:[%s143 + $0x150] sm:$0xff]
        %v258 = vld [vmem:[%s143 + $0x158] sm:$0xff]
        %v259 = vld [vmem:[%s143 + $0x160] sm:$0xff]
        %v260 = vld [vmem:[%s143 + $0x168] sm:$0xff]
        %v261 = vld [vmem:[%s143 + $0x170] sm:$0xff]
        %v262 = vld [vmem:[%s143 + $0x178] sm:$0xff]
        %v263 = vld [vmem:[%s143 + $0x180] sm:$0xff]
        %v264 = vld [vmem:[%s143 + $0x188] sm:$0xff]
        %v265 = vld [vmem:[%s143 + $0x190] sm:$0xff]
        %v266 = vld [vmem:[%s143 + $0x198] sm:$0xff]
        %v267 = vld [vmem:[%s143 + $0x1a0] sm:$0xff]
        %v268 = vld [vmem:[%s143 + $0x1a8] sm:$0xff]
        %v269 = vld [vmem:[%s143 + $0x1b0] sm:$0xff]
        %v270 = vld [vmem:[%s143 + $0x1b8] sm:$0xff]
        %v271 = vld [vmem:[%s143 + $0x1c0] sm:$0xff]
        %v272 = vld [vmem:[%s143 + $0x1c8] sm:$0xff]
        %v273 = vld [vmem:[%s143 + $0x1d0] sm:$0xff]
        %v274 = vld [vmem:[%s143 + $0x1d8] sm:$0xff]
        %v275 = vld [vmem:[%s143 + $0x1e0] sm:$0xff]
        %v276 = vld [vmem:[%s143 + $0x1e8] sm:$0xff]
        %v277 = vld [vmem:[%s143 + $0x1f0] sm:$0xff]
        %v278 = vld [vmem:[%s143 + $0x1f8] sm:$0xff]
        %v279 = vmax.f32 %v215, 1e-06
        %v280 = vmax.f32 %v216, 1e-06
        %v281 = vmax.f32 %v217, 1e-06
        %v282 = vmax.f32 %v218, 1e-06
        %v283 = vmax.f32 %v219, 1e-06
        %v284 = vmax.f32 %v220, 1e-06
        %v285 = vmax.f32 %v221, 1e-06
        %v286 = vmax.f32 %v222, 1e-06
        %v287 = vmax.f32 %v223, 1e-06
        %v288 = vmax.f32 %v224, 1e-06
        %v289 = vmax.f32 %v225, 1e-06
        %v290 = vmax.f32 %v226, 1e-06
        %v291 = vmax.f32 %v227, 1e-06
        %v292 = vmax.f32 %v228, 1e-06
        %v293 = vmax.f32 %v229, 1e-06
        %v294 = vmax.f32 %v230, 1e-06
        %v295 = vmax.f32 %v231, 1e-06
        %v296 = vmax.f32 %v232, 1e-06
        %v297 = vmax.f32 %v233, 1e-06
        %v298 = vmax.f32 %v234, 1e-06
        %v299 = vmax.f32 %v235, 1e-06
        %v300 = vmax.f32 %v236, 1e-06
        %v301 = vmax.f32 %v237, 1e-06
        %v302 = vmax.f32 %v238, 1e-06
        %v303 = vmax.f32 %v239, 1e-06
        %v304 = vmax.f32 %v240, 1e-06
        %v305 = vmax.f32 %v241, 1e-06
        %v306 = vmax.f32 %v242, 1e-06
        %v307 = vmax.f32 %v243, 1e-06
        %v308 = vmax.f32 %v244, 1e-06
        %v309 = vmax.f32 %v245, 1e-06
        %v310 = vmax.f32 %v246, 1e-06
        %v311 = vmax.f32 %v247, 1e-06
        %v312 = vmax.f32 %v248, 1e-06
        %v313 = vmax.f32 %v249, 1e-06
        %v314 = vmax.f32 %v250, 1e-06
        %v315 = vmax.f32 %v251, 1e-06
        %v316 = vmax.f32 %v252, 1e-06
        %v317 = vmax.f32 %v253, 1e-06
        %v318 = vmax.f32 %v254, 1e-06
        %v319 = vmax.f32 %v255, 1e-06
        %v320 = vmax.f32 %v256, 1e-06
        %v321 = vmax.f32 %v257, 1e-06
        %v322 = vmax.f32 %v258, 1e-06
        %v323 = vmax.f32 %v259, 1e-06
        %v324 = vmax.f32 %v260, 1e-06
        %v325 = vmax.f32 %v261, 1e-06
        %v326 = vmax.f32 %v262, 1e-06
        %v327 = vmax.f32 %v263, 1e-06
        %v328 = vmax.f32 %v264, 1e-06
        %v329 = vmax.f32 %v265, 1e-06
        %v330 = vmax.f32 %v266, 1e-06
        %v331 = vmax.f32 %v267, 1e-06
        %v332 = vmax.f32 %v268, 1e-06
        %v333 = vmax.f32 %v269, 1e-06
        %v334 = vmax.f32 %v270, 1e-06
        %v335 = vmax.f32 %v271, 1e-06
        %v336 = vmax.f32 %v272, 1e-06
        %v337 = vmax.f32 %v273, 1e-06
        %v338 = vmax.f32 %v274, 1e-06
        %v339 = vmax.f32 %v275, 1e-06
        %v340 = vmax.f32 %v276, 1e-06
        %v341 = vmax.f32 %v277, 1e-06
        %v342 = vmax.f32 %v278, 1e-06
        %v343 = vmul.f32 %v279, %v279
        %v344 = vmul.f32 %v280, %v280
        %v345 = vmul.f32 %v281, %v281
        %v346 = vmul.f32 %v282, %v282
        %v347 = vmul.f32 %v283, %v283
        %v348 = vmul.f32 %v284, %v284
        %v349 = vmul.f32 %v285, %v285
        %v350 = vmul.f32 %v286, %v286
        %v351 = vmul.f32 %v287, %v287
        %v352 = vmul.f32 %v288, %v288
        %v353 = vmul.f32 %v289, %v289
        %v354 = vmul.f32 %v290, %v290
        %v355 = vmul.f32 %v291, %v291
        %v356 = vmul.f32 %v292, %v292
        %v357 = vmul.f32 %v293, %v293
        %v358 = vmul.f32 %v294, %v294
        %v359 = vmul.f32 %v295, %v295
        %v360 = vmul.f32 %v296, %v296
        %v361 = vmul.f32 %v297, %v297
        %v362 = vmul.f32 %v298, %v298
        %v363 = vmul.f32 %v299, %v299
        %v364 = vmul.f32 %v300, %v300
        %v365 = vmul.f32 %v301, %v301
        %v366 = vmul.f32 %v302, %v302
        %v367 = vmul.f32 %v303, %v303
        %v368 = vmul.f32 %v304, %v304
        %v369 = vmul.f32 %v305, %v305
        %v370 = vmul.f32 %v306, %v306
        %v371 = vmul.f32 %v307, %v307
        %v372 = vmul.f32 %v308, %v308
        %v373 = vmul.f32 %v309, %v309
        %v374 = vmul.f32 %v310, %v310
        %v375 = vmul.f32 %v311, %v311
        %v376 = vmul.f32 %v312, %v312
        %v377 = vmul.f32 %v313, %v313
        %v378 = vmul.f32 %v314, %v314
        %v379 = vmul.f32 %v315, %v315
        %v380 = vmul.f32 %v316, %v316
        %v381 = vmul.f32 %v317, %v317
        %v382 = vmul.f32 %v318, %v318
        %v383 = vmul.f32 %v319, %v319
        %v384 = vmul.f32 %v320, %v320
        %v385 = vmul.f32 %v321, %v321
        %v386 = vmul.f32 %v322, %v322
        %v387 = vmul.f32 %v323, %v323
        %v388 = vmul.f32 %v324, %v324
        %v389 = vmul.f32 %v325, %v325
        %v390 = vmul.f32 %v326, %v326
        %v391 = vmul.f32 %v327, %v327
        %v392 = vmul.f32 %v328, %v328
        %v393 = vmul.f32 %v329, %v329
        %v394 = vmul.f32 %v330, %v330
        %v395 = vmul.f32 %v331, %v331
        %v396 = vmul.f32 %v332, %v332
        %v397 = vmul.f32 %v333, %v333
        %v398 = vmul.f32 %v334, %v334
        %v399 = vmul.f32 %v335, %v335
        %v400 = vmul.f32 %v336, %v336
        %v401 = vmul.f32 %v337, %v337
        %v402 = vmul.f32 %v338, %v338
        %v403 = vmul.f32 %v339, %v339
        %v404 = vmul.f32 %v340, %v340
        %v405 = vmul.f32 %v341, %v341
        %v406 = vmul.f32 %v342, %v342
        %v407 = vmul.f32 %v279, %v343
        %v408 = vmul.f32 %v280, %v344
        %v409 = vmul.f32 %v281, %v345
        %v410 = vmul.f32 %v282, %v346
        %v411 = vmul.f32 %v283, %v347
        %v412 = vmul.f32 %v284, %v348
        %v413 = vmul.f32 %v285, %v349
        %v414 = vmul.f32 %v286, %v350
        %v415 = vmul.f32 %v287, %v351
        %v416 = vmul.f32 %v288, %v352
        %v417 = vmul.f32 %v289, %v353
        %v418 = vmul.f32 %v290, %v354
        %v419 = vmul.f32 %v291, %v355
        %v420 = vmul.f32 %v292, %v356
        %v421 = vmul.f32 %v293, %v357
        %v422 = vmul.f32 %v294, %v358
        %v423 = vmul.f32 %v295, %v359
        %v424 = vmul.f32 %v296, %v360
        %v425 = vmul.f32 %v297, %v361
        %v426 = vmul.f32 %v298, %v362
        %v427 = vmul.f32 %v299, %v363
        %v428 = vmul.f32 %v300, %v364
        %v429 = vmul.f32 %v301, %v365
        %v430 = vmul.f32 %v302, %v366
        %v431 = vmul.f32 %v303, %v367
        %v432 = vmul.f32 %v304, %v368
        %v433 = vmul.f32 %v305, %v369
        %v434 = vmul.f32 %v306, %v370
        %v435 = vmul.f32 %v307, %v371
        %v436 = vmul.f32 %v308, %v372
        %v437 = vmul.f32 %v309, %v373
        %v438 = vmul.f32 %v310, %v374
        %v439 = vmul.f32 %v311, %v375
        %v440 = vmul.f32 %v312, %v376
        %v441 = vmul.f32 %v313, %v377
        %v442 = vmul.f32 %v314, %v378
        %v443 = vmul.f32 %v315, %v379
        %v444 = vmul.f32 %v316, %v380
        %v445 = vmul.f32 %v317, %v381
        %v446 = vmul.f32 %v318, %v382
        %v447 = vmul.f32 %v319, %v383
        %v448 = vmul.f32 %v320, %v384
        %v449 = vmul.f32 %v321, %v385
        %v450 = vmul.f32 %v322, %v386
        %v451 = vmul.f32 %v323, %v387
        %v452 = vmul.f32 %v324, %v388
        %v453 = vmul.f32 %v325, %v389
        %v454 = vmul.f32 %v326, %v390
        %v455 = vmul.f32 %v327, %v391
        %v456 = vmul.f32 %v328, %v392
        %v457 = vmul.f32 %v329, %v393
        %v458 = vmul.f32 %v330, %v394
        %v459 = vmul.f32 %v331, %v395
        %v460 = vmul.f32 %v332, %v396
        %v461 = vmul.f32 %v333, %v397
        %v462 = vmul.f32 %v334, %v398
        %v463 = vmul.f32 %v335, %v399
        %v464 = vmul.f32 %v336, %v400
        %v465 = vmul.f32 %v337, %v401
        %v466 = vmul.f32 %v338, %v402
        %v467 = vmul.f32 %v339, %v403
        %v468 = vmul.f32 %v340, %v404
        %v469 = vmul.f32 %v341, %v405
        %v470 = vmul.f32 %v342, %v406
        %v471 = vld [vmem:[%s176] sm:$0xff]
        %v472 = vld [vmem:[%s176 + $0x8] sm:$0xff]
        %v473 = vld [vmem:[%s176 + $0x10] sm:$0xff]
        %v474 = vld [vmem:[%s176 + $0x18] sm:$0xff]
        %v475 = vld [vmem:[%s176 + $0x20] sm:$0xff]
        %v476 = vld [vmem:[%s176 + $0x28] sm:$0xff]
        %v477 = vld [vmem:[%s176 + $0x30] sm:$0xff]
        %v478 = vld [vmem:[%s176 + $0x38] sm:$0xff]
        %v479 = vld [vmem:[%s176 + $0x40] sm:$0xff]
        %v480 = vld [vmem:[%s176 + $0x48] sm:$0xff]
        %v481 = vld [vmem:[%s176 + $0x50] sm:$0xff]
        %v482 = vld [vmem:[%s176 + $0x58] sm:$0xff]
        %v483 = vld [vmem:[%s176 + $0x60] sm:$0xff]
        %v484 = vld [vmem:[%s176 + $0x68] sm:$0xff]
        %v485 = vld [vmem:[%s176 + $0x70] sm:$0xff]
        %v486 = vld [vmem:[%s176 + $0x78] sm:$0xff]
        %v487 = vld [vmem:[%s176 + $0x80] sm:$0xff]
        %v488 = vld [vmem:[%s176 + $0x88] sm:$0xff]
        %v489 = vld [vmem:[%s176 + $0x90] sm:$0xff]
        %v490 = vld [vmem:[%s176 + $0x98] sm:$0xff]
        %v491 = vld [vmem:[%s176 + $0xa0] sm:$0xff]
        %v492 = vld [vmem:[%s176 + $0xa8] sm:$0xff]
        %v493 = vld [vmem:[%s176 + $0xb0] sm:$0xff]
        %v494 = vld [vmem:[%s176 + $0xb8] sm:$0xff]
        %v495 = vld [vmem:[%s176 + $0xc0] sm:$0xff]
        %v496 = vld [vmem:[%s176 + $0xc8] sm:$0xff]
        %v497 = vld [vmem:[%s176 + $0xd0] sm:$0xff]
        %v498 = vld [vmem:[%s176 + $0xd8] sm:$0xff]
        %v499 = vld [vmem:[%s176 + $0xe0] sm:$0xff]
        %v500 = vld [vmem:[%s176 + $0xe8] sm:$0xff]
        %v501 = vld [vmem:[%s176 + $0xf0] sm:$0xff]
        %v502 = vld [vmem:[%s176 + $0xf8] sm:$0xff]
        %v503 = vadd.f32 %v407, %v408
        %504 = vadd.xlane.f32.xlu0 %v503
        %v505 = vpop.xlane.xlu0 %504
        %v506 = vadd.f32 %v409, %v410
        %507 = vadd.xlane.f32.xlu0 %v506
        %v508 = vpop.xlane.xlu0 %507
        %v509 = vadd.f32 %v411, %v412
        %510 = vadd.xlane.f32.xlu0 %v509
        %v511 = vpop.xlane.xlu0 %510
        %v512 = vadd.f32 %v413, %v414
        %513 = vadd.xlane.f32.xlu0 %v512
        %v514 = vpop.xlane.xlu0 %513
        %v515 = vadd.f32 %v415, %v416
        %516 = vadd.xlane.f32.xlu0 %v515
        %v517 = vpop.xlane.xlu0 %516
        %v518 = vadd.f32 %v417, %v418
        %519 = vadd.xlane.f32.xlu0 %v518
        %v520 = vpop.xlane.xlu0 %519
        %v521 = vadd.f32 %v419, %v420
        %522 = vadd.xlane.f32.xlu0 %v521
        %v523 = vpop.xlane.xlu0 %522
        %v524 = vadd.f32 %v421, %v422
        %525 = vadd.xlane.f32.xlu0 %v524
        %v526 = vpop.xlane.xlu0 %525
        %v527 = vadd.f32 %v423, %v424
        %528 = vadd.xlane.f32.xlu0 %v527
        %v529 = vpop.xlane.xlu0 %528
        %v530 = vadd.f32 %v425, %v426
        %531 = vadd.xlane.f32.xlu0 %v530
        %v532 = vpop.xlane.xlu0 %531
        %v533 = vadd.f32 %v427, %v428
        %534 = vadd.xlane.f32.xlu0 %v533
        %v535 = vpop.xlane.xlu0 %534
        %v536 = vadd.f32 %v429, %v430
        %537 = vadd.xlane.f32.xlu0 %v536
        %v538 = vpop.xlane.xlu0 %537
        %v539 = vadd.f32 %v431, %v432
        %540 = vadd.xlane.f32.xlu0 %v539
        %v541 = vpop.xlane.xlu0 %540
        %v542 = vadd.f32 %v433, %v434
        %543 = vadd.xlane.f32.xlu0 %v542
        %v544 = vpop.xlane.xlu0 %543
        %v545 = vadd.f32 %v435, %v436
        %546 = vadd.xlane.f32.xlu0 %v545
        %v547 = vpop.xlane.xlu0 %546
        %v548 = vadd.f32 %v437, %v438
        %549 = vadd.xlane.f32.xlu0 %v548
        %v550 = vpop.xlane.xlu0 %549
        %v551 = vadd.f32 %v439, %v440
        %552 = vadd.xlane.f32.xlu0 %v551
        %v553 = vpop.xlane.xlu0 %552
        %v554 = vadd.f32 %v441, %v442
        %555 = vadd.xlane.f32.xlu0 %v554
        %v556 = vpop.xlane.xlu0 %555
        %v557 = vadd.f32 %v443, %v444
        %558 = vadd.xlane.f32.xlu0 %v557
        %v559 = vpop.xlane.xlu0 %558
        %v560 = vadd.f32 %v445, %v446
        %561 = vadd.xlane.f32.xlu0 %v560
        %v562 = vpop.xlane.xlu0 %561
        %v563 = vadd.f32 %v447, %v448
        %564 = vadd.xlane.f32.xlu0 %v563
        %v565 = vpop.xlane.xlu0 %564
        %v566 = vadd.f32 %v449, %v450
        %567 = vadd.xlane.f32.xlu0 %v566
        %v568 = vpop.xlane.xlu0 %567
        %v569 = vadd.f32 %v451, %v452
        %570 = vadd.xlane.f32.xlu0 %v569
        %v571 = vpop.xlane.xlu0 %570
        %v572 = vadd.f32 %v453, %v454
        %573 = vadd.xlane.f32.xlu0 %v572
        %v574 = vpop.xlane.xlu0 %573
        %v575 = vadd.f32 %v455, %v456
        %576 = vadd.xlane.f32.xlu0 %v575
        %v577 = vpop.xlane.xlu0 %576
        %v578 = vadd.f32 %v457, %v458
        %579 = vadd.xlane.f32.xlu0 %v578
        %v580 = vpop.xlane.xlu0 %579
        %v581 = vadd.f32 %v459, %v460
        %582 = vadd.xlane.f32.xlu0 %v581
        %v583 = vpop.xlane.xlu0 %582
        %v584 = vadd.f32 %v461, %v462
        %585 = vadd.xlane.f32.xlu0 %v584
        %v586 = vpop.xlane.xlu0 %585
        %v587 = vadd.f32 %v463, %v464
        %588 = vadd.xlane.f32.xlu0 %v587
        %v589 = vpop.xlane.xlu0 %588
        %v590 = vadd.f32 %v465, %v466
        %591 = vadd.xlane.f32.xlu0 %v590
        %v592 = vpop.xlane.xlu0 %591
        %v593 = vadd.f32 %v467, %v468
        %594 = vadd.xlane.f32.xlu0 %v593
        %v595 = vpop.xlane.xlu0 %594
        %v596 = vadd.f32 %v469, %v470
        %597 = vadd.xlane.f32.xlu0 %v596
        %v598 = vpop.xlane.xlu0 %597
        %v599 = vadd.f32 %v471, %v505
        %v600 = vadd.f32 %v472, %v508
        %v601 = vadd.f32 %v473, %v511
        %v602 = vadd.f32 %v474, %v514
        %v603 = vadd.f32 %v475, %v517
        %v604 = vadd.f32 %v476, %v520
        %v605 = vadd.f32 %v477, %v523
        %v606 = vadd.f32 %v478, %v526
        %v607 = vadd.f32 %v479, %v529
        %v608 = vadd.f32 %v480, %v532
        %v609 = vadd.f32 %v481, %v535
        %v610 = vadd.f32 %v482, %v538
        %v611 = vadd.f32 %v483, %v541
        %v612 = vadd.f32 %v484, %v544
        %v613 = vadd.f32 %v485, %v547
        %v614 = vadd.f32 %v486, %v550
        %v615 = vadd.f32 %v487, %v553
        %v616 = vadd.f32 %v488, %v556
        %v617 = vadd.f32 %v489, %v559
        %v618 = vadd.f32 %v490, %v562
        %v619 = vadd.f32 %v491, %v565
        %v620 = vadd.f32 %v492, %v568
        %v621 = vadd.f32 %v493, %v571
        %v622 = vadd.f32 %v494, %v574
        %v623 = vadd.f32 %v495, %v577
        %v624 = vadd.f32 %v496, %v580
        %v625 = vadd.f32 %v497, %v583
        %v626 = vadd.f32 %v498, %v586
        %v627 = vadd.f32 %v499, %v589
        %v628 = vadd.f32 %v500, %v592
        %v629 = vadd.f32 %v501, %v595
        %v630 = vadd.f32 %v502, %v598
        %vm631 = vcmask 7168
        %632 = vst.msk [vmem:[%s176] sm:$0xff] %vm631, %v599
        %633 = vst.msk [vmem:[%s176 + $0x8] sm:$0xff] %vm631, %v600
        %634 = vst.msk [vmem:[%s176 + $0x10] sm:$0xff] %vm631, %v601
        %635 = vst.msk [vmem:[%s176 + $0x18] sm:$0xff] %vm631, %v602
        %636 = vst.msk [vmem:[%s176 + $0x20] sm:$0xff] %vm631, %v603
        %637 = vst.msk [vmem:[%s176 + $0x28] sm:$0xff] %vm631, %v604
        %638 = vst.msk [vmem:[%s176 + $0x30] sm:$0xff] %vm631, %v605
        %639 = vst.msk [vmem:[%s176 + $0x38] sm:$0xff] %vm631, %v606
        %640 = vst.msk [vmem:[%s176 + $0x40] sm:$0xff] %vm631, %v607
        %641 = vst.msk [vmem:[%s176 + $0x48] sm:$0xff] %vm631, %v608
        %642 = vst.msk [vmem:[%s176 + $0x50] sm:$0xff] %vm631, %v609
        %643 = vst.msk [vmem:[%s176 + $0x58] sm:$0xff] %vm631, %v610
        %644 = vst.msk [vmem:[%s176 + $0x60] sm:$0xff] %vm631, %v611
        %645 = vst.msk [vmem:[%s176 + $0x68] sm:$0xff] %vm631, %v612
        %646 = vst.msk [vmem:[%s176 + $0x70] sm:$0xff] %vm631, %v613
        %647 = vst.msk [vmem:[%s176 + $0x78] sm:$0xff] %vm631, %v614
        %648 = vst.msk [vmem:[%s176 + $0x80] sm:$0xff] %vm631, %v615
        %649 = vst.msk [vmem:[%s176 + $0x88] sm:$0xff] %vm631, %v616
        %650 = vst.msk [vmem:[%s176 + $0x90] sm:$0xff] %vm631, %v617
        %651 = vst.msk [vmem:[%s176 + $0x98] sm:$0xff] %vm631, %v618
        %652 = vst.msk [vmem:[%s176 + $0xa0] sm:$0xff] %vm631, %v619
        %653 = vst.msk [vmem:[%s176 + $0xa8] sm:$0xff] %vm631, %v620
        %654 = vst.msk [vmem:[%s176 + $0xb0] sm:$0xff] %vm631, %v621
        %655 = vst.msk [vmem:[%s176 + $0xb8] sm:$0xff] %vm631, %v622
        %656 = vst.msk [vmem:[%s176 + $0xc0] sm:$0xff] %vm631, %v623
        %657 = vst.msk [vmem:[%s176 + $0xc8] sm:$0xff] %vm631, %v624
        %658 = vst.msk [vmem:[%s176 + $0xd0] sm:$0xff] %vm631, %v625
        %659 = vst.msk [vmem:[%s176 + $0xd8] sm:$0xff] %vm631, %v626
        %660 = vst.msk [vmem:[%s176 + $0xe0] sm:$0xff] %vm631, %v627
        %661 = vst.msk [vmem:[%s176 + $0xe8] sm:$0xff] %vm631, %v628
        %662 = vst.msk [vmem:[%s176 + $0xf0] sm:$0xff] %vm631, %v629
        %663 = vst.msk [vmem:[%s176 + $0xf8] sm:$0xff] %vm631, %v630
        // Predicated region
        $region33: #{tpu_custom_call.1} parent=23 // pred_check
          %p664 = pneg %p178
        $region34: #{tpu_custom_call.1} parent=23 // pred_check_branch
          %666 = sbr.rel (%p664) target = $region36
        $region35: #{tpu_custom_call.1} parent=23 // pred_region
          %v667 = vld [vmem:[%s176] sm:$0xff]
          %v668 = vld [vmem:[%s176 + $0x8] sm:$0xff]
          %v669 = vld [vmem:[%s176 + $0x10] sm:$0xff]
          %v670 = vld [vmem:[%s176 + $0x18] sm:$0xff]
          %v671 = vld [vmem:[%s176 + $0x20] sm:$0xff]
          %v672 = vld [vmem:[%s176 + $0x28] sm:$0xff]
          %v673 = vld [vmem:[%s176 + $0x30] sm:$0xff]
          %v674 = vld [vmem:[%s176 + $0x38] sm:$0xff]
          %v675 = vld [vmem:[%s176 + $0x40] sm:$0xff]
          %v676 = vld [vmem:[%s176 + $0x48] sm:$0xff]
          %v677 = vld [vmem:[%s176 + $0x50] sm:$0xff]
          %v678 = vld [vmem:[%s176 + $0x58] sm:$0xff]
          %v679 = vld [vmem:[%s176 + $0x60] sm:$0xff]
          %v680 = vld [vmem:[%s176 + $0x68] sm:$0xff]
          %v681 = vld [vmem:[%s176 + $0x70] sm:$0xff]
          %v682 = vld [vmem:[%s176 + $0x78] sm:$0xff]
          %v683 = vld [vmem:[%s176 + $0x80] sm:$0xff]
          %v684 = vld [vmem:[%s176 + $0x88] sm:$0xff]
          %v685 = vld [vmem:[%s176 + $0x90] sm:$0xff]
          %v686 = vld [vmem:[%s176 + $0x98] sm:$0xff]
          %v687 = vld [vmem:[%s176 + $0xa0] sm:$0xff]
          %v688 = vld [vmem:[%s176 + $0xa8] sm:$0xff]
          %v689 = vld [vmem:[%s176 + $0xb0] sm:$0xff]
          %v690 = vld [vmem:[%s176 + $0xb8] sm:$0xff]
          %v691 = vld [vmem:[%s176 + $0xc0] sm:$0xff]
          %v692 = vld [vmem:[%s176 + $0xc8] sm:$0xff]
          %v693 = vld [vmem:[%s176 + $0xd0] sm:$0xff]
          %v694 = vld [vmem:[%s176 + $0xd8] sm:$0xff]
          %v695 = vld [vmem:[%s176 + $0xe0] sm:$0xff]
          %v696 = vld [vmem:[%s176 + $0xe8] sm:$0xff]
          %v697 = vld [vmem:[%s176 + $0xf0] sm:$0xff]
          %v698 = vld [vmem:[%s176 + $0xf8] sm:$0xff]
          %v699 = vlog2.pop %v667
          %v700 = vmul.f32 %v699, 0.6931472
          %v701 = vlog2.pop %v668
          %v702 = vmul.f32 %v701, 0.6931472
          %v703 = vlog2.pop %v669
          %v704 = vmul.f32 %v703, 0.6931472
          %v705 = vlog2.pop %v670
          %v706 = vmul.f32 %v705, 0.6931472
          %v707 = vlog2.pop %v671
          %v708 = vmul.f32 %v707, 0.6931472
          %v709 = vlog2.pop %v672
          %v710 = vmul.f32 %v709, 0.6931472
          %v711 = vlog2.pop %v673
          %v712 = vmul.f32 %v711, 0.6931472
          %v713 = vlog2.pop %v674
          %v714 = vmul.f32 %v713, 0.6931472
          %v715 = vlog2.pop %v675
          %v716 = vmul.f32 %v715, 0.6931472
          %v717 = vlog2.pop %v676
          %v718 = vmul.f32 %v717, 0.6931472
          %v719 = vlog2.pop %v677
          %v720 = vmul.f32 %v719, 0.6931472
          %v721 = vlog2.pop %v678
          %v722 = vmul.f32 %v721, 0.6931472
          %v723 = vlog2.pop %v679
          %v724 = vmul.f32 %v723, 0.6931472
          %v725 = vlog2.pop %v680
          %v726 = vmul.f32 %v725, 0.6931472
          %v727 = vlog2.pop %v681
          %v728 = vmul.f32 %v727, 0.6931472
          %v729 = vlog2.pop %v682
          %v730 = vmul.f32 %v729, 0.6931472
          %v731 = vlog2.pop %v683
          %v732 = vmul.f32 %v731, 0.6931472
          %v733 = vlog2.pop %v684
          %v734 = vmul.f32 %v733, 0.6931472
          %v735 = vlog2.pop %v685
          %v736 = vmul.f32 %v735, 0.6931472
          %v737 = vlog2.pop %v686
          %v738 = vmul.f32 %v737, 0.6931472
          %v739 = vlog2.pop %v687
          %v740 = vmul.f32 %v739, 0.6931472
          %v741 = vlog2.pop %v688
          %v742 = vmul.f32 %v741, 0.6931472
          %v743 = vlog2.pop %v689
          %v744 = vmul.f32 %v743, 0.6931472
          %v745 = vlog2.pop %v690
          %v746 = vmul.f32 %v745, 0.6931472
          %v747 = vlog2.pop %v691
          %v748 = vmul.f32 %v747, 0.6931472
          %v749 = vlog2.pop %v692
          %v750 = vmul.f32 %v749, 0.6931472
          %v751 = vlog2.pop %v693
          %v752 = vmul.f32 %v751, 0.6931472
          %v753 = vlog2.pop %v694
          %v754 = vmul.f32 %v753, 0.6931472
          %v755 = vlog2.pop %v695
          %v756 = vmul.f32 %v755, 0.6931472
          %v757 = vlog2.pop %v696
          %v758 = vmul.f32 %v757, 0.6931472
          %v759 = vlog2.pop %v697
          %v760 = vmul.f32 %v759, 0.6931472
          %v761 = vlog2.pop %v698
          %v762 = vmul.f32 %v761, 0.6931472
          %v763 = vsub.f32 %v700, 5.5451775
          %v764 = vsub.f32 %v702, 5.5451775
          %v765 = vsub.f32 %v704, 5.5451775
          %v766 = vsub.f32 %v706, 5.5451775
          %v767 = vsub.f32 %v708, 5.5451775
          %v768 = vsub.f32 %v710, 5.5451775
          %v769 = vsub.f32 %v712, 5.5451775
          %v770 = vsub.f32 %v714, 5.5451775
          %v771 = vsub.f32 %v716, 5.5451775
          %v772 = vsub.f32 %v718, 5.5451775
          %v773 = vsub.f32 %v720, 5.5451775
          %v774 = vsub.f32 %v722, 5.5451775
          %v775 = vsub.f32 %v724, 5.5451775
          %v776 = vsub.f32 %v726, 5.5451775
          %v777 = vsub.f32 %v728, 5.5451775
          %v778 = vsub.f32 %v730, 5.5451775
          %v779 = vsub.f32 %v732, 5.5451775
          %v780 = vsub.f32 %v734, 5.5451775
          %v781 = vsub.f32 %v736, 5.5451775
          %v782 = vsub.f32 %v738, 5.5451775
          %v783 = vsub.f32 %v740, 5.5451775
          %v784 = vsub.f32 %v742, 5.5451775
          %v785 = vsub.f32 %v744, 5.5451775
          %v786 = vsub.f32 %v746, 5.5451775
          %v787 = vsub.f32 %v748, 5.5451775
          %v788 = vsub.f32 %v750, 5.5451775
          %v789 = vsub.f32 %v752, 5.5451775
          %v790 = vsub.f32 %v754, 5.5451775
          %v791 = vsub.f32 %v756, 5.5451775
          %v792 = vsub.f32 %v758, 5.5451775
          %v793 = vsub.f32 %v760, 5.5451775
          %v794 = vsub.f32 %v762, 5.5451775
          %v795 = vmul.f32 %v763, 0.33333334
          %v796 = vmul.f32 %v764, 0.33333334
          %v797 = vmul.f32 %v765, 0.33333334
          %v798 = vmul.f32 %v766, 0.33333334
          %v799 = vmul.f32 %v767, 0.33333334
          %v800 = vmul.f32 %v768, 0.33333334
          %v801 = vmul.f32 %v769, 0.33333334
          %v802 = vmul.f32 %v770, 0.33333334
          %v803 = vmul.f32 %v771, 0.33333334
          %v804 = vmul.f32 %v772, 0.33333334
          %v805 = vmul.f32 %v773, 0.33333334
          %v806 = vmul.f32 %v774, 0.33333334
          %v807 = vmul.f32 %v775, 0.33333334
          %v808 = vmul.f32 %v776, 0.33333334
          %v809 = vmul.f32 %v777, 0.33333334
          %v810 = vmul.f32 %v778, 0.33333334
          %v811 = vmul.f32 %v779, 0.33333334
          %v812 = vmul.f32 %v780, 0.33333334
          %v813 = vmul.f32 %v781, 0.33333334
          %v814 = vmul.f32 %v782, 0.33333334
          %v815 = vmul.f32 %v783, 0.33333334
          %v816 = vmul.f32 %v784, 0.33333334
          %v817 = vmul.f32 %v785, 0.33333334
          %v818 = vmul.f32 %v786, 0.33333334
          %v819 = vmul.f32 %v787, 0.33333334
          %v820 = vmul.f32 %v788, 0.33333334
          %v821 = vmul.f32 %v789, 0.33333334
          %v822 = vmul.f32 %v790, 0.33333334
          %v823 = vmul.f32 %v791, 0.33333334
          %v824 = vmul.f32 %v792, 0.33333334
          %v825 = vmul.f32 %v793, 0.33333334
          %v826 = vmul.f32 %v794, 0.33333334
          %v827 = vmul.f32 %v795, 1.442695
          %v828 = vpow.pop %v827
          %v829 = vmul.f32 %v796, 1.442695
          %v830 = vpow.pop %v829
          %v831 = vmul.f32 %v797, 1.442695
          %v832 = vpow.pop %v831
          %v833 = vmul.f32 %v798, 1.442695
          %v834 = vpow.pop %v833
          %v835 = vmul.f32 %v799, 1.442695
          %v836 = vpow.pop %v835
          %v837 = vmul.f32 %v800, 1.442695
          %v838 = vpow.pop %v837
          %v839 = vmul.f32 %v801, 1.442695
          %v840 = vpow.pop %v839
          %v841 = vmul.f32 %v802, 1.442695
          %v842 = vpow.pop %v841
          %v843 = vmul.f32 %v803, 1.442695
          %v844 = vpow.pop %v843
          %v845 = vmul.f32 %v804, 1.442695
          %v846 = vpow.pop %v845
          %v847 = vmul.f32 %v805, 1.442695
          %v848 = vpow.pop %v847
          %v849 = vmul.f32 %v806, 1.442695
          %v850 = vpow.pop %v849
          %v851 = vmul.f32 %v807, 1.442695
          %v852 = vpow.pop %v851
          %v853 = vmul.f32 %v808, 1.442695
          %v854 = vpow.pop %v853
          %v855 = vmul.f32 %v809, 1.442695
          %v856 = vpow.pop %v855
          %v857 = vmul.f32 %v810, 1.442695
          %v858 = vpow.pop %v857
          %v859 = vmul.f32 %v811, 1.442695
          %v860 = vpow.pop %v859
          %v861 = vmul.f32 %v812, 1.442695
          %v862 = vpow.pop %v861
          %v863 = vmul.f32 %v813, 1.442695
          %v864 = vpow.pop %v863
          %v865 = vmul.f32 %v814, 1.442695
          %v866 = vpow.pop %v865
          %v867 = vmul.f32 %v815, 1.442695
          %v868 = vpow.pop %v867
          %v869 = vmul.f32 %v816, 1.442695
          %v870 = vpow.pop %v869
          %v871 = vmul.f32 %v817, 1.442695
          %v872 = vpow.pop %v871
          %v873 = vmul.f32 %v818, 1.442695
          %v874 = vpow.pop %v873
          %v875 = vmul.f32 %v819, 1.442695
          %v876 = vpow.pop %v875
          %v877 = vmul.f32 %v820, 1.442695
          %v878 = vpow.pop %v877
          %v879 = vmul.f32 %v821, 1.442695
          %v880 = vpow.pop %v879
          %v881 = vmul.f32 %v822, 1.442695
          %v882 = vpow.pop %v881
          %v883 = vmul.f32 %v823, 1.442695
          %v884 = vpow.pop %v883
          %v885 = vmul.f32 %v824, 1.442695
          %v886 = vpow.pop %v885
          %v887 = vmul.f32 %v825, 1.442695
          %v888 = vpow.pop %v887
          %v889 = vmul.f32 %v826, 1.442695
          %v890 = vpow.pop %v889
          %891 = vst.msk [vmem:[%s176] sm:$0xff] %vm631, %v828
          %892 = vst.msk [vmem:[%s176 + $0x8] sm:$0xff] %vm631, %v830
          %893 = vst.msk [vmem:[%s176 + $0x10] sm:$0xff] %vm631, %v832
          %894 = vst.msk [vmem:[%s176 + $0x18] sm:$0xff] %vm631, %v834
          %895 = vst.msk [vmem:[%s176 + $0x20] sm:$0xff] %vm631, %v836
          %896 = vst.msk [vmem:[%s176 + $0x28] sm:$0xff] %vm631, %v838
          %897 = vst.msk [vmem:[%s176 + $0x30] sm:$0xff] %vm631, %v840
          %898 = vst.msk [vmem:[%s176 + $0x38] sm:$0xff] %vm631, %v842
          %899 = vst.msk [vmem:[%s176 + $0x40] sm:$0xff] %vm631, %v844
          %900 = vst.msk [vmem:[%s176 + $0x48] sm:$0xff] %vm631, %v846
          %901 = vst.msk [vmem:[%s176 + $0x50] sm:$0xff] %vm631, %v848
          %902 = vst.msk [vmem:[%s176 + $0x58] sm:$0xff] %vm631, %v850
          %903 = vst.msk [vmem:[%s176 + $0x60] sm:$0xff] %vm631, %v852
          %904 = vst.msk [vmem:[%s176 + $0x68] sm:$0xff] %vm631, %v854
          %905 = vst.msk [vmem:[%s176 + $0x70] sm:$0xff] %vm631, %v856
          %906 = vst.msk [vmem:[%s176 + $0x78] sm:$0xff] %vm631, %v858
          %907 = vst.msk [vmem:[%s176 + $0x80] sm:$0xff] %vm631, %v860
          %908 = vst.msk [vmem:[%s176 + $0x88] sm:$0xff] %vm631, %v862
          %909 = vst.msk [vmem:[%s176 + $0x90] sm:$0xff] %vm631, %v864
          %910 = vst.msk [vmem:[%s176 + $0x98] sm:$0xff] %vm631, %v866
          %911 = vst.msk [vmem:[%s176 + $0xa0] sm:$0xff] %vm631, %v868
          %912 = vst.msk [vmem:[%s176 + $0xa8] sm:$0xff] %vm631, %v870
          %913 = vst.msk [vmem:[%s176 + $0xb0] sm:$0xff] %vm631, %v872
          %914 = vst.msk [vmem:[%s176 + $0xb8] sm:$0xff] %vm631, %v874
          %915 = vst.msk [vmem:[%s176 + $0xc0] sm:$0xff] %vm631, %v876
          %916 = vst.msk [vmem:[%s176 + $0xc8] sm:$0xff] %vm631, %v878
          %917 = vst.msk [vmem:[%s176 + $0xd0] sm:$0xff] %vm631, %v880
          %918 = vst.msk [vmem:[%s176 + $0xd8] sm:$0xff] %vm631, %v882
          %919 = vst.msk [vmem:[%s176 + $0xe0] sm:$0xff] %vm631, %v884
          %920 = vst.msk [vmem:[%s176 + $0xe8] sm:$0xff] %vm631, %v886
          %921 = vst.msk [vmem:[%s176 + $0xf0] sm:$0xff] %vm631, %v888
          %922 = vst.msk [vmem:[%s176 + $0xf8] sm:$0xff] %vm631, %v890
        $region36: #{tpu_custom_call.1} parent=23 // pred_fallthru
          _
        %s923 = smul.u32 32, %s21
        %p924 = scmp.lt.s32.totalorder %s20, 1
        %s925 = scalar_select %p924, %s20, 1
        %p926 = scmp.lt.s32.totalorder %s923, 31
        %s927 = scalar_select %p926, %s923, 31
        %s928 = smul.addr %s925, 32
        %s929 = sadd.s32 %s927, %s928
        %s930 = smul.addr %s929, 8
        %s931 = scalar_lea.vmem %s1, %s930
        // Predicated region
        $region37: #{tpu_custom_call.1} parent=23 // pred_check
          %p932 = pneg %p84
        $region38: #{tpu_custom_call.1} parent=23 // pred_check_branch
          %934 = sbr.rel (%p932) target = $region40
        $region39: #{tpu_custom_call.1} parent=23 // pred_region
          %s935 = smul.u32 32, %s21
        $region40: #{tpu_custom_call.1} parent=23 // pred_fallthru
          _
      $region24: #{tpu_custom_call.1} parent=5 // pred_fallthru
        _
      %p936 = scmp.le.s32.totalorder 2, %s10
      // Predicated region
      $region41: #{tpu_custom_call.1} parent=5 // pred_check
        %p937 = pneg %p936
      $region42: #{tpu_custom_call.1} parent=5 // pred_check_branch
        %939 = sbr.rel (%p937) target = $region44
      $region43: #{tpu_custom_call.1} parent=5 // pred_region
        %s940 = ssub.s32 %s10, 2
        // Predicated region
        $region45: #{tpu_custom_call.1} parent=43 // pred_check
          %p941 = pneg %p90
        $region46: #{tpu_custom_call.1} parent=43 // pred_check_branch
          %943 = sbr.rel (%p941) target = $region48
        $region47: #{tpu_custom_call.1} parent=43 // pred_region
          %s944 = smul.u32 32, %s24
          %p945 = scmp.lt.s32.totalorder %s23, 1
          %s946 = scalar_select %p945, %s23, 1
          %p947 = scmp.lt.s32.totalorder %s944, 31
          %s948 = scalar_select %p947, %s944, 31
          %s949 = smul.addr %s946, 32
          %s950 = sadd.s32 %s948, %s949
          %s951 = smul.addr %s950, 8
          %s952 = scalar_lea.vmem %s1, %s951
        $region48: #{tpu_custom_call.1} parent=43 // pred_fallthru
          _
      $region44: #{tpu_custom_call.1} parent=5 // pred_fallthru
        _
    $region6: #{tpu_custom_call.1} parent=1 // loop_footer
      %s14 = sadd.s32 1, %s10
    $region7: #{tpu_custom_call.1} parent=1 // loop_footer_branch
      %9 = sbr.rel target = $region3
    $region8: #{tpu_custom_call.1} parent=1 // loop_exit
      _
    %953 = vsyncpa [#allocation3], 1
    %s954 = scalar_lea.sflag [#allocation3], 1
    %955 = vsyncpa %s954, 1

</llo_original>
